<compile_context>
chip_gen: v7x
topology: tpu7x:2x2x1
jax: 0.10.0
libtpu: 0.0.40
codegen_flags: <defaults>
</compile_context>

<pallas_src>
import jax
import jax.numpy as jnp
from jax.experimental import pallas as pl
from jax.experimental.pallas import tpu as pltpu


def mlp_kernel(x_ref, w1_ref, b1_ref, w2_ref, b2_ref, w3_ref, b3_ref, o_ref):
    # x_ref: (tile_rows, 128) f32 -- 16 samples x 8 features per lane-dense row.
    x = x_ref[...]

    # ---- Linear(8, 8) as a 128x128 block-diagonal MXU matmul + bias ----
    h = jnp.dot(x, w1_ref[...], preferred_element_type=jnp.float32) + b1_ref[...]
    # LeakyReLU (negative_slope = 0.01): max(h, 0.01*h) -- no compare+select.
    h = jnp.maximum(h, 0.01 * h)

    # ---- Linear(8, 4): (tile_rows, 128) @ (128, 64) ----
    h = jnp.dot(h, w2_ref[...], preferred_element_type=jnp.float32) + b2_ref[...]
    h = jnp.maximum(h, 0.01 * h)

    # ---- Linear(4, 1): (tile_rows, 64) @ (64, 16) -> one lane per sample ----
    h = jnp.dot(h, w3_ref[...], preferred_element_type=jnp.float32) + b3_ref[...]

    # ---- Sigmoid ---- (exp on the EUP; exact formula keeps 1e-5 tolerance)
    o_ref[...] = (1.0 / (1.0 + jnp.exp(-h))).astype(o_ref.dtype)


def model1_forward(x, params, *, block_rows=4096):
    """Forward pass of model_1.  x: (B, 8) float32 -> (B, 1) float32."""
    B, D = x.shape
    assert D == 8
    w1, b1, w2, b2, w3, b3 = params

    # --- transpose-free input packing: (B, 8) -> (rows, 128) ---------------
    PACK = 16                                   # samples per 128-lane row
    B_pad = ((B + PACK - 1) // PACK) * PACK
    xp = x if B_pad == B else jnp.pad(x, ((0, B_pad - B), (0, 0)))
    rows = B_pad // PACK
    xr = xp.reshape(rows, PACK * D)             # contiguous re-view, lane-dense

    # --- batch tiling -------------------------------------------------------
    # 4096 rows = 65536 samples = 2 MiB per x block; partial last tile OK, so
    # padding is never inflated to a tile multiple.
    tile_rows = max(8, (int(block_rows) // 8) * 8)
    tile_rows = min(tile_rows, rows)
    num_tiles = pl.cdiv(rows, tile_rows)

    # --- block-diagonal replicated weights (tiny, built once per call) -----
    # y_row = x_row @ kron(I_16, W.T): each 8-lane sample slot gets its own
    # copy of the layer weights.
    eye = jnp.eye(PACK, dtype=jnp.float32)
    bd1 = jnp.kron(eye, w1.T)                   # (128, 128)
    bd2 = jnp.kron(eye, w2.T)                   # (128, 64)
    bd3 = jnp.kron(eye, w3.T)                   # (64, 16)
    b1r = jnp.tile(b1, PACK).reshape(1, PACK * 8)   # (1, 128)
    b2r = jnp.tile(b2, PACK).reshape(1, PACK * 4)   # (1, 64)
    b3r = jnp.tile(b3, PACK).reshape(1, PACK * 1)   # (1, 16)

    # Constant index maps => weights/biases are fetched into VMEM once and stay
    # resident; only x and the output actually stream per grid step.
    const = lambda shape: pl.BlockSpec(shape, lambda i: (0, 0))

    out = pl.pallas_call(
        mlp_kernel,
        out_shape=jax.ShapeDtypeStruct((rows, PACK), jnp.float32),
        grid=(num_tiles,),
        in_specs=[
            pl.BlockSpec((tile_rows, 128), lambda i: (i, 0)),   # x (streamed)
            const((128, 128)), const((1, 128)),                 # layer 1
            const((128, 64)),  const((1, 64)),                  # layer 2
            const((64, 16)),   const((1, 16)),                  # layer 3
        ],
        out_specs=pl.BlockSpec((tile_rows, PACK), lambda i: (i, 0)),
        compiler_params=pltpu.CompilerParams(
            dimension_semantics=("parallel",),      # megacore-splittable
            vmem_limit_bytes=32 * 1024 * 1024,      # safe on v5e/v6e/v7x
        ),
    )(xr, bd1, b1r, bd2, b2r, bd3, b3r)

    # (rows, 16) is exactly (B_pad, 1) reshaped (free); slice only if padded.
    out = out.reshape(B_pad, 1)
    return out if B_pad == B else out[:B]


def init_params(key):
    """Deterministic init matching nn.Linear shapes (LeakyReLU has no params)."""
    ks = jax.random.split(key, 6)

    def linear(kw, kb, fan_in, fan_out):
        bound = 1.0 / jnp.sqrt(fan_in)
        w = jax.random.uniform(kw, (fan_out, fan_in), jnp.float32, -bound, bound)
        b = jax.random.uniform(kb, (fan_out,), jnp.float32, -bound, bound)
        return w, b

    w1, b1 = linear(ks[0], ks[1], 8, 8)
    w2, b2 = linear(ks[2], ks[3], 8, 4)
    w3, b3 = linear(ks[4], ks[5], 4, 1)
    return (w1, b1, w2, b2, w3, b3)


def model1_reference(x, params):
    w1, b1, w2, b2, w3, b3 = params
    leaky = lambda v: jnp.where(v >= 0, v, 0.01 * v)
    h = leaky(x @ w1.T + b1)
    h = leaky(h @ w2.T + b2)
    return jax.nn.sigmoid(h @ w3.T + b3)


if __name__ == "__main__":
    key = jax.random.PRNGKey(0)
    kx, kp = jax.random.split(key)
    params = init_params(kp)

    # Small shapes: B=300 exercises 16-sample packing padding (300 -> 304 rows*16).
    B = 300
    x = jax.random.normal(kx, (B, 8), jnp.float32)
    ref = model1_reference(x, params)

    # 1) Default config: one large tile (covers the whole 19-row packed batch).
    out = jax.block_until_ready(model1_forward(x, params))
    assert out.shape == (B, 1)
    assert jnp.allclose(out, ref, atol=1e-5, rtol=1e-5), (out, ref)

    # 2) Multi-tile config with a partial trailing tile (19 rows, 8-row tiles).
    out2 = jax.block_until_ready(model1_forward(x, params, block_rows=8))
    assert jnp.allclose(out2, ref, atol=1e-5, rtol=1e-5), (out2, ref)

    # 3) Exactly-dividing multi-tile config, no padding at all.
    B3 = 256
    x3 = jax.random.normal(kx, (B3, 8), jnp.float32)
    out3 = jax.block_until_ready(model1_forward(x3, params, block_rows=8))
    assert jnp.allclose(out3, model1_reference(x3, params), atol=1e-5, rtol=1e-5)

    print("KERNEL_OK")
</pallas_src>

<mosaic_0001>
module attributes {stable_mosaic.version = 11 : i64} {
  func.func @mlp_kernel(%arg0: i32, %arg1: memref<19x128xf32, #tpu.memory_space<vmem>>, %arg2: memref<128x128xf32, #tpu.memory_space<vmem>>, %arg3: memref<1x128xf32, #tpu.memory_space<vmem>>, %arg4: memref<128x64xf32, #tpu.memory_space<vmem>>, %arg5: memref<1x64xf32, #tpu.memory_space<vmem>>, %arg6: memref<64x16xf32, #tpu.memory_space<vmem>>, %arg7: memref<1x16xf32, #tpu.memory_space<vmem>>, %arg8: memref<19x16xf32, #tpu.memory_space<vmem>>) attributes {dimension_semantics = [#tpu.dimension_semantics<parallel>], iteration_bounds = array<i64: 1>, scalar_prefetch = 0 : i64, scratch_operands = 0 : i64, tpu.core_type = #tpu.core_type<tc>, window_params = [{transform_indices = @transform_0, window_bounds = array<i64: 19, 128>}, {pipeline_mode = #tpu.pipeline_mode<synchronous>, transform_indices = @transform_1, window_bounds = array<i64: 128, 128>}, {pipeline_mode = #tpu.pipeline_mode<synchronous>, transform_indices = @transform_2, window_bounds = array<i64: 1, 128>}, {pipeline_mode = #tpu.pipeline_mode<synchronous>, transform_indices = @transform_3, window_bounds = array<i64: 128, 64>}, {pipeline_mode = #tpu.pipeline_mode<synchronous>, transform_indices = @transform_4, window_bounds = array<i64: 1, 64>}, {pipeline_mode = #tpu.pipeline_mode<synchronous>, transform_indices = @transform_5, window_bounds = array<i64: 64, 16>}, {pipeline_mode = #tpu.pipeline_mode<synchronous>, transform_indices = @transform_6, window_bounds = array<i64: 1, 16>}, {transform_indices = @transform_7, window_bounds = array<i64: 19, 16>}]} {
    %c0 = arith.constant 0 : index
    %c0_0 = arith.constant 0 : index
    %0 = vector.load %arg1[%c0, %c0_0] : memref<19x128xf32, #tpu.memory_space<vmem>>, vector<19x128xf32>
    %c0_1 = arith.constant 0 : index
    %c0_2 = arith.constant 0 : index
    %1 = vector.load %arg2[%c0_1, %c0_2] : memref<128x128xf32, #tpu.memory_space<vmem>>, vector<128x128xf32>
    %cst = arith.constant dense<0.000000e+00> : vector<19x128xf32>
    %2 = tpu.matmul %0, %1, %cst {dimension_numbers = #tpu.dot_dimension_numbers<[1], [0], [0], [1], [0, 0, 1, 1], [], []>} : vector<19x128xf32>, vector<128x128xf32>, vector<19x128xf32> -> vector<19x128xf32>
    %c0_3 = arith.constant 0 : index
    %c0_4 = arith.constant 0 : index
    %3 = vector.load %arg3[%c0_3, %c0_4] : memref<1x128xf32, #tpu.memory_space<vmem>>, vector<1x128xf32>
    %4 = vector.broadcast %3 : vector<1x128xf32> to vector<19x128xf32>
    %5 = arith.addf %2, %4 : vector<19x128xf32>
    %cst_5 = arith.constant 0.00999999977 : f32
    %6 = vector.broadcast %cst_5 : f32 to vector<19x128xf32>
    %7 = arith.mulf %6, %5 : vector<19x128xf32>
    %8 = arith.maximumf %5, %7 : vector<19x128xf32>
    %c0_6 = arith.constant 0 : index
    %c0_7 = arith.constant 0 : index
    %9 = vector.load %arg4[%c0_6, %c0_7] : memref<128x64xf32, #tpu.memory_space<vmem>>, vector<128x64xf32>
    %cst_8 = arith.constant dense<0.000000e+00> : vector<19x64xf32>
    %10 = tpu.matmul %8, %9, %cst_8 {dimension_numbers = #tpu.dot_dimension_numbers<[1], [0], [0], [1], [0, 0, 1, 1], [], []>} : vector<19x128xf32>, vector<128x64xf32>, vector<19x64xf32> -> vector<19x64xf32>
    %c0_9 = arith.constant 0 : index
    %c0_10 = arith.constant 0 : index
    %11 = vector.load %arg5[%c0_9, %c0_10] : memref<1x64xf32, #tpu.memory_space<vmem>>, vector<1x64xf32>
    %12 = vector.broadcast %11 : vector<1x64xf32> to vector<19x64xf32>
    %13 = arith.addf %10, %12 : vector<19x64xf32>
    %cst_11 = arith.constant 0.00999999977 : f32
    %14 = vector.broadcast %cst_11 : f32 to vector<19x64xf32>
    %15 = arith.mulf %14, %13 : vector<19x64xf32>
    %16 = arith.maximumf %13, %15 : vector<19x64xf32>
    %c0_12 = arith.constant 0 : index
    %c0_13 = arith.constant 0 : index
    %17 = vector.load %arg6[%c0_12, %c0_13] : memref<64x16xf32, #tpu.memory_space<vmem>>, vector<64x16xf32>
    %cst_14 = arith.constant dense<0.000000e+00> : vector<19x16xf32>
    %18 = tpu.matmul %16, %17, %cst_14 {dimension_numbers = #tpu.dot_dimension_numbers<[1], [0], [0], [1], [0, 0, 1, 1], [], []>} : vector<19x64xf32>, vector<64x16xf32>, vector<19x16xf32> -> vector<19x16xf32>
    %c0_15 = arith.constant 0 : index
    %c0_16 = arith.constant 0 : index
    %19 = vector.load %arg7[%c0_15, %c0_16] : memref<1x16xf32, #tpu.memory_space<vmem>>, vector<1x16xf32>
    %20 = vector.broadcast %19 : vector<1x16xf32> to vector<19x16xf32>
    %21 = arith.addf %18, %20 : vector<19x16xf32>
    %cst_17 = arith.constant 0.000000e+00 : f32
    %22 = vector.broadcast %cst_17 : f32 to vector<19x16xf32>
    %23 = arith.subf %22, %21 : vector<19x16xf32>
    %24 = math.exp %23 : vector<19x16xf32>
    %cst_18 = arith.constant 1.000000e+00 : f32
    %25 = vector.broadcast %cst_18 : f32 to vector<19x16xf32>
    %26 = arith.addf %25, %24 : vector<19x16xf32>
    %cst_19 = arith.constant 1.000000e+00 : f32
    %27 = vector.broadcast %cst_19 : f32 to vector<19x16xf32>
    %28 = arith.divf %27, %26 : vector<19x16xf32>
    %c0_20 = arith.constant 0 : index
    %c0_21 = arith.constant 0 : index
    %29 = vector.load %arg8[%c0_20, %c0_21] : memref<19x16xf32, #tpu.memory_space<vmem>>, vector<19x16xf32>
    tpu.vector_store %arg8[%c0_20, %c0_21], %28 {strides = array<i32>} : memref<19x16xf32, #tpu.memory_space<vmem>>, vector<19x16xf32>,
    return
  }
  func.func @transform_0(%arg0: i32) -> (i32, i32) {
    %c0_i32 = arith.constant 0 : i32
    %c0_i32_0 = arith.constant 0 : i32
    return %arg0, %c0_i32 : i32, i32
  }
  func.func @transform_1(%arg0: i32) -> (i32, i32) {
    %c0_i32 = arith.constant 0 : i32
    %c0_i32_0 = arith.constant 0 : i32
    %c0_i32_1 = arith.constant 0 : i32
    return %c0_i32, %c0_i32_0 : i32, i32
  }
  func.func @transform_2(%arg0: i32) -> (i32, i32) {
    %c0_i32 = arith.constant 0 : i32
    %c0_i32_0 = arith.constant 0 : i32
    %c0_i32_1 = arith.constant 0 : i32
    return %c0_i32, %c0_i32_0 : i32, i32
  }
  func.func @transform_3(%arg0: i32) -> (i32, i32) {
    %c0_i32 = arith.constant 0 : i32
    %c0_i32_0 = arith.constant 0 : i32
    %c0_i32_1 = arith.constant 0 : i32
    return %c0_i32, %c0_i32_0 : i32, i32
  }
  func.func @transform_4(%arg0: i32) -> (i32, i32) {
    %c0_i32 = arith.constant 0 : i32
    %c0_i32_0 = arith.constant 0 : i32
    %c0_i32_1 = arith.constant 0 : i32
    return %c0_i32, %c0_i32_0 : i32, i32
  }
  func.func @transform_5(%arg0: i32) -> (i32, i32) {
    %c0_i32 = arith.constant 0 : i32
    %c0_i32_0 = arith.constant 0 : i32
    %c0_i32_1 = arith.constant 0 : i32
    return %c0_i32, %c0_i32_0 : i32, i32
  }
  func.func @transform_6(%arg0: i32) -> (i32, i32) {
    %c0_i32 = arith.constant 0 : i32
    %c0_i32_0 = arith.constant 0 : i32
    %c0_i32_1 = arith.constant 0 : i32
    return %c0_i32, %c0_i32_0 : i32, i32
  }
  func.func @transform_7(%arg0: i32) -> (i32, i32) {
    %c0_i32 = arith.constant 0 : i32
    %c0_i32_0 = arith.constant 0 : i32
    return %arg0, %c0_i32 : i32, i32
  }
}

</mosaic_0001>

<llo_original>
// kernel: tpu_custom_call.1
$region0: #{tpu_custom_call.1}
  #allocation0 [shape = 'u32[]', space=smem, size = 0x4, offset = 0x4, fixed_abs, tag = 'smem constant byte address 0x4 - core index']
  #allocation1 [shape = 'u32[144,128]{1,0:T(1,128)}', space=vmem, size = 0x12000, scoped, tag = 'internal scratch']
  %s0 = inlined_call_operand.vmem [shape: f32[19,128], index: 0, kind: input, shape index: {}]
  %s1 = inlined_call_operand.vmem [shape: f32[128,128], index: 1, kind: input, shape index: {}]
  %s2 = inlined_call_operand.vmem [shape: f32[1,128], index: 2, kind: input, shape index: {}]
  %s3 = inlined_call_operand.vmem [shape: f32[128,64], index: 3, kind: input, shape index: {}]
  %s4 = inlined_call_operand.vmem [shape: f32[1,64], index: 4, kind: input, shape index: {}]
  %s5 = inlined_call_operand.vmem [shape: f32[64,16], index: 5, kind: input, shape index: {}]
  %s6 = inlined_call_operand.vmem [shape: f32[1,16], index: 6, kind: input, shape index: {}]
  %s7 = inlined_call_operand.vmem [shape: f32[19,16], index: 7, kind: output, shape index: {}]
  %s8 = sld [smem:[#allocation0]]
  $region38: #{tpu_custom_call.1} parent=0
    _
  %s10 = ssub.s32 1, %s8
  %s11 = scalar_select 0, %s10, %s8
  // Predicated region
  $region2: #{tpu_custom_call.1} parent=0 // pred_check
    _
  $region3: #{tpu_custom_call.1} parent=0 // pred_check_branch
    %13 = sbr.rel (0) target = $region5
  $region4: #{tpu_custom_call.1} parent=0 // pred_region
    _
  $region5: #{tpu_custom_call.1} parent=0 // pred_fallthru
    _
  // Predicated region
  $region6: #{tpu_custom_call.1} parent=0 // pred_check
    _
  $region7: #{tpu_custom_call.1} parent=0 // pred_check_branch
    %15 = sbr.rel (0) target = $region9
  $region8: #{tpu_custom_call.1} parent=0 // pred_region
    _
  $region9: #{tpu_custom_call.1} parent=0 // pred_fallthru
    _
  // Predicated region
  $region10: #{tpu_custom_call.1} parent=0 // pred_check
    _
  $region11: #{tpu_custom_call.1} parent=0 // pred_check_branch
    %17 = sbr.rel (0) target = $region13
  $region12: #{tpu_custom_call.1} parent=0 // pred_region
    _
  $region13: #{tpu_custom_call.1} parent=0 // pred_fallthru
    _
  // Predicated region
  $region14: #{tpu_custom_call.1} parent=0 // pred_check
    _
  $region15: #{tpu_custom_call.1} parent=0 // pred_check_branch
    %19 = sbr.rel (0) target = $region17
  $region16: #{tpu_custom_call.1} parent=0 // pred_region
    _
  $region17: #{tpu_custom_call.1} parent=0 // pred_fallthru
    _
  // Predicated region
  $region18: #{tpu_custom_call.1} parent=0 // pred_check
    _
  $region19: #{tpu_custom_call.1} parent=0 // pred_check_branch
    %21 = sbr.rel (0) target = $region21
  $region20: #{tpu_custom_call.1} parent=0 // pred_region
    _
  $region21: #{tpu_custom_call.1} parent=0 // pred_fallthru
    _
  // Predicated region
  $region22: #{tpu_custom_call.1} parent=0 // pred_check
    _
  $region23: #{tpu_custom_call.1} parent=0 // pred_check_branch
    %23 = sbr.rel (0) target = $region25
  $region24: #{tpu_custom_call.1} parent=0 // pred_region
    _
  $region25: #{tpu_custom_call.1} parent=0 // pred_fallthru
    _
  // Predicated region
  $region26: #{tpu_custom_call.1} parent=0 // pred_check
    _
  $region27: #{tpu_custom_call.1} parent=0 // pred_check_branch
    %25 = sbr.rel (0) target = $region29
  $region28: #{tpu_custom_call.1} parent=0 // pred_region
    _
  $region29: #{tpu_custom_call.1} parent=0 // pred_fallthru
    _
  %v26 = vld [vmem:[%s0] sm:$0xff]
  %v27 = vld [vmem:[%s0 + $0x8] sm:$0xff]
  %v28 = vld [vmem:[%s0 + $0x10] sm:$0x7]
  %v29 = vld [vmem:[%s1] sm:$0xff]
  %v30 = vld [vmem:[%s1 + $0x8] sm:$0xff]
  %v31 = vld [vmem:[%s1 + $0x10] sm:$0xff]
  %v32 = vld [vmem:[%s1 + $0x18] sm:$0xff]
  %v33 = vld [vmem:[%s1 + $0x20] sm:$0xff]
  %v34 = vld [vmem:[%s1 + $0x28] sm:$0xff]
  %v35 = vld [vmem:[%s1 + $0x30] sm:$0xff]
  %v36 = vld [vmem:[%s1 + $0x38] sm:$0xff]
  %v37 = vld [vmem:[%s1 + $0x40] sm:$0xff]
  %v38 = vld [vmem:[%s1 + $0x48] sm:$0xff]
  %v39 = vld [vmem:[%s1 + $0x50] sm:$0xff]
  %v40 = vld [vmem:[%s1 + $0x58] sm:$0xff]
  %v41 = vld [vmem:[%s1 + $0x60] sm:$0xff]
  %v42 = vld [vmem:[%s1 + $0x68] sm:$0xff]
  %v43 = vld [vmem:[%s1 + $0x70] sm:$0xff]
  %v44 = vld [vmem:[%s1 + $0x78] sm:$0xff]
  %v45 = vld [vmem:[%s2] sm:$0x1]
  %v47 = vlaneseq
  %v48 = vshrl.u32 %v47, 7
  %v49 = vsub.s32 0, %v48
  %v50 = vrot.slane %v45, %v49
  %52 = vmatprep.subr.mxu0 0.0
  %53 = vmatpush1.msra.mxu0 %v29
  %54 = vmatprep.subr.mxu0 0.0
  %55 = vmatpush1.msra.mxu0 %v30
  %56 = vmatprep.subr.mxu0 0.0
  %57 = vmatpush1.msra.mxu0 %v31
  %58 = vmatprep.subr.mxu0 0.0
  %59 = vmatpush1.msra.mxu0 %v32
  %60 = vmatprep.subr.mxu0 0.0
  %61 = vmatpush1.msra.mxu0 %v33
  %62 = vmatprep.subr.mxu0 0.0
  %63 = vmatpush1.msra.mxu0 %v34
  %64 = vmatprep.subr.mxu0 0.0
  %65 = vmatpush1.msra.mxu0 %v35
  %66 = vmatprep.subr.mxu0 0.0
  %67 = vmatpush1.msra.mxu0 %v36
  %68 = vmatprep.subr.mxu0 0.0
  %69 = vmatpush1.msra.mxu0 %v37
  %70 = vmatprep.subr.mxu0 0.0
  %71 = vmatpush1.msra.mxu0 %v38
  %72 = vmatprep.subr.mxu0 0.0
  %73 = vmatpush1.msra.mxu0 %v39
  %74 = vmatprep.subr.mxu0 0.0
  %75 = vmatpush1.msra.mxu0 %v40
  %76 = vmatprep.subr.mxu0 0.0
  %77 = vmatpush1.msra.mxu0 %v41
  %78 = vmatprep.subr.mxu0 0.0
  %79 = vmatpush1.msra.mxu0 %v42
  %80 = vmatprep.subr.mxu0 0.0
  %81 = vmatpush1.msra.mxu0 %v43
  %82 = vmatprep.subr.mxu0 0.0
  %83 = vmatpush1.msra.mxu0 %v44
  %84 = vmatprep.subr.mxu0 0.0
  %85 = vmatpush1.msra.mxu0 0.0
  %86 = vmatprep.subr.mxu0 0.0
  %87 = vmatpush1.msra.mxu0 0.0
  %88 = vmatprep.subr.mxu0 0.0
  %89 = vmatpush1.msra.mxu0 0.0
  %90 = vmatprep.subr.mxu0 0.0
  %91 = vmatpush1.msra.mxu0 0.0
  %92 = vmatprep.subr.mxu0 0.0
  %93 = vmatpush1.msra.mxu0 0.0
  %94 = vmatprep.subr.mxu0 0.0
  %95 = vmatpush1.msra.mxu0 0.0
  %96 = vmatprep.subr.mxu0 0.0
  %97 = vmatpush1.msra.mxu0 0.0
  %98 = vmatprep.subr.mxu0 0.0
  %99 = vmatpush1.msra.mxu0 0.0
  %100 = vmatprep.subr.mxu0 0.0
  %101 = vmatpush1.msra.mxu0 0.0
  %102 = vmatprep.subr.mxu0 0.0
  %103 = vmatpush1.msra.mxu0 0.0
  %104 = vmatprep.subr.mxu0 0.0
  %105 = vmatpush1.msra.mxu0 0.0
  %106 = vmatprep.subr.mxu0 0.0
  %107 = vmatpush1.msra.mxu0 0.0
  %108 = vmatprep.subr.mxu0 0.0
  %109 = vmatpush1.msra.mxu0 0.0
  %110 = vmatprep.subr.mxu0 0.0
  %111 = vmatpush1.msra.mxu0 0.0
  %112 = vmatprep.subr.mxu0 0.0
  %113 = vmatpush1.msra.mxu0 0.0
  %114 = vmatprep.subr.mxu0 0.0
  %115 = vmatpush1.msra.mxu0 0.0
  %116 = vmatprep.mubr.f32.mxu0 0.0
  %117 = vmatmul.mubr.f32.gmra.mrb[0].mxu0 %v26
  %v118 = vpop.f32.mrb[0].mxu0
  %v119 = vadd.f32 %v50, %v118
  %v120 = vpop.f32.mrb[0].mxu0
  %121 = vmatprep.mubr.f32.mxu0 0.0
  %122 = vmatmul.mubr.f32.gmra.mrb[0].mxu0 %v27
  %v123 = vpop.f32.mrb[0].mxu0
  %v124 = vadd.f32 %v50, %v123
  %v125 = vpop.f32.mrb[0].mxu0
  %126 = vmatprep.mubr.f32.mxu0 0.0
  %127 = vmatmul.mubr.f32.gmra.mrb[0].mxu0 %v28
  %v128 = vpop.f32.mrb[0].mxu0
  %v129 = vadd.f32 %v50, %v128
  %v130 = vpop.f32.mrb[0].mxu0
  %131 = vdwg.mxu0
  %v132 = vmul.f32 %v119, 0.01
  %v133 = vmul.f32 %v124, 0.01
  %v134 = vmul.f32 %v129, 0.01
  %v135 = vmax.f32 %v119, %v132
  %v136 = vmax.f32 %v124, %v133
  %v137 = vmax.f32 %v129, %v134
  %v138 = vld [vmem:[%s3] sm:$0xff]
  %v139 = vld [vmem:[%s3 + $0x8] sm:$0xff]
  %v140 = vld [vmem:[%s3 + $0x10] sm:$0xff]
  %v141 = vld [vmem:[%s3 + $0x18] sm:$0xff]
  %v142 = vld [vmem:[%s3 + $0x20] sm:$0xff]
  %v143 = vld [vmem:[%s3 + $0x28] sm:$0xff]
  %v144 = vld [vmem:[%s3 + $0x30] sm:$0xff]
  %v145 = vld [vmem:[%s3 + $0x38] sm:$0xff]
  %v146 = vld [vmem:[%s3 + $0x40] sm:$0xff]
  %v147 = vld [vmem:[%s3 + $0x48] sm:$0xff]
  %v148 = vld [vmem:[%s3 + $0x50] sm:$0xff]
  %v149 = vld [vmem:[%s3 + $0x58] sm:$0xff]
  %v150 = vld [vmem:[%s3 + $0x60] sm:$0xff]
  %v151 = vld [vmem:[%s3 + $0x68] sm:$0xff]
  %v152 = vld [vmem:[%s3 + $0x70] sm:$0xff]
  %v153 = vld [vmem:[%s3 + $0x78] sm:$0xff]
  %v154 = vld [vmem:[%s4] sm:$0x1]
  %v156 = vlaneseq
  %v157 = vshrl.u32 %v156, 7
  %v158 = vsub.s32 0, %v157
  %v159 = vrot.slane %v154, %v158
  %161 = vmatprep.subr.mxu0 0.0
  %162 = vmatpush1.msra.mxu0 %v138
  %163 = vmatprep.subr.mxu0 0.0
  %164 = vmatpush1.msra.mxu0 %v139
  %165 = vmatprep.subr.mxu0 0.0
  %166 = vmatpush1.msra.mxu0 %v140
  %167 = vmatprep.subr.mxu0 0.0
  %168 = vmatpush1.msra.mxu0 %v141
  %169 = vmatprep.subr.mxu0 0.0
  %170 = vmatpush1.msra.mxu0 %v142
  %171 = vmatprep.subr.mxu0 0.0
  %172 = vmatpush1.msra.mxu0 %v143
  %173 = vmatprep.subr.mxu0 0.0
  %174 = vmatpush1.msra.mxu0 %v144
  %175 = vmatprep.subr.mxu0 0.0
  %176 = vmatpush1.msra.mxu0 %v145
  %177 = vmatprep.subr.mxu0 0.0
  %178 = vmatpush1.msra.mxu0 %v146
  %179 = vmatprep.subr.mxu0 0.0
  %180 = vmatpush1.msra.mxu0 %v147
  %181 = vmatprep.subr.mxu0 0.0
  %182 = vmatpush1.msra.mxu0 %v148
  %183 = vmatprep.subr.mxu0 0.0
  %184 = vmatpush1.msra.mxu0 %v149
  %185 = vmatprep.subr.mxu0 0.0
  %186 = vmatpush1.msra.mxu0 %v150
  %187 = vmatprep.subr.mxu0 0.0
  %188 = vmatpush1.msra.mxu0 %v151
  %189 = vmatprep.subr.mxu0 0.0
  %190 = vmatpush1.msra.mxu0 %v152
  %191 = vmatprep.subr.mxu0 0.0
  %192 = vmatpush1.msra.mxu0 %v153
  %193 = vmatprep.subr.mxu0 0.0
  %194 = vmatpush1.msra.mxu0 0.0
  %195 = vmatprep.subr.mxu0 0.0
  %196 = vmatpush1.msra.mxu0 0.0
  %197 = vmatprep.subr.mxu0 0.0
  %198 = vmatpush1.msra.mxu0 0.0
  %199 = vmatprep.subr.mxu0 0.0
  %200 = vmatpush1.msra.mxu0 0.0
  %201 = vmatprep.subr.mxu0 0.0
  %202 = vmatpush1.msra.mxu0 0.0
  %203 = vmatprep.subr.mxu0 0.0
  %204 = vmatpush1.msra.mxu0 0.0
  %205 = vmatprep.subr.mxu0 0.0
  %206 = vmatpush1.msra.mxu0 0.0
  %207 = vmatprep.subr.mxu0 0.0
  %208 = vmatpush1.msra.mxu0 0.0
  %209 = vmatprep.subr.mxu0 0.0
  %210 = vmatpush1.msra.mxu0 0.0
  %211 = vmatprep.subr.mxu0 0.0
  %212 = vmatpush1.msra.mxu0 0.0
  %213 = vmatprep.subr.mxu0 0.0
  %214 = vmatpush1.msra.mxu0 0.0
  %215 = vmatprep.subr.mxu0 0.0
  %216 = vmatpush1.msra.mxu0 0.0
  %217 = vmatprep.subr.mxu0 0.0
  %218 = vmatpush1.msra.mxu0 0.0
  %219 = vmatprep.subr.mxu0 0.0
  %220 = vmatpush1.msra.mxu0 0.0
  %221 = vmatprep.subr.mxu0 0.0
  %222 = vmatpush1.msra.mxu0 0.0
  %223 = vmatprep.subr.mxu0 0.0
  %224 = vmatpush1.msra.mxu0 0.0
  %225 = vmatprep.mubr.f32.mxu0 0.0
  %226 = vmatmul.mubr.f32.gmra.mrb[0].mxu0 %v135
  %v227 = vpop.f32.mrb[0].mxu0
  %v228 = vadd.f32 %v159, %v227
  %v229 = vpop.f32.mrb[0].mxu0
  %230 = vmatprep.mubr.f32.mxu0 0.0
  %231 = vmatmul.mubr.f32.gmra.mrb[0].mxu0 %v136
  %v232 = vpop.f32.mrb[0].mxu0
  %v233 = vadd.f32 %v159, %v232
  %v234 = vpop.f32.mrb[0].mxu0
  %235 = vmatprep.mubr.f32.mxu0 0.0
  %236 = vmatmul.mubr.f32.gmra.mrb[0].mxu0 %v137
  %v237 = vpop.f32.mrb[0].mxu0
  %v238 = vadd.f32 %v159, %v237
  %v239 = vpop.f32.mrb[0].mxu0
  %240 = vdwg.mxu0
  %v241 = vmul.f32 %v228, 0.01
  %v242 = vmul.f32 %v233, 0.01
  %v243 = vmul.f32 %v238, 0.01
  %v244 = vmax.f32 %v228, %v241
  %v245 = vmax.f32 %v233, %v242
  %v246 = vmax.f32 %v238, %v243
  %v247 = vld [vmem:[%s5] sm:$0xff]
  %v248 = vld [vmem:[%s5 + $0x8] sm:$0xff]
  %v249 = vld [vmem:[%s5 + $0x10] sm:$0xff]
  %v250 = vld [vmem:[%s5 + $0x18] sm:$0xff]
  %v251 = vld [vmem:[%s5 + $0x20] sm:$0xff]
  %v252 = vld [vmem:[%s5 + $0x28] sm:$0xff]
  %v253 = vld [vmem:[%s5 + $0x30] sm:$0xff]
  %v254 = vld [vmem:[%s5 + $0x38] sm:$0xff]
  %v255 = vld [vmem:[%s6] sm:$0x1]
  %v257 = vlaneseq
  %v258 = vshrl.u32 %v257, 7
  %v259 = vsub.s32 0, %v258
  %v260 = vrot.slane %v255, %v259
  %vm262 = vcmask 523264
  %v264 = vsel %vm262, %v244, 0
  %v267 = vsel %vm262, %v245, 0
  %v270 = vsel %vm262, %v246, 0
  %272 = vmatprep.subr.mxu0 0.0
  %273 = vmatpush1.msra.mxu0 %v247
  %274 = vmatprep.subr.mxu0 0.0
  %275 = vmatpush1.msra.mxu0 %v248
  %276 = vmatprep.subr.mxu0 0.0
  %277 = vmatpush1.msra.mxu0 %v249
  %278 = vmatprep.subr.mxu0 0.0
  %279 = vmatpush1.msra.mxu0 %v250
  %280 = vmatprep.subr.mxu0 0.0
  %281 = vmatpush1.msra.mxu0 %v251
  %282 = vmatprep.subr.mxu0 0.0
  %283 = vmatpush1.msra.mxu0 %v252
  %284 = vmatprep.subr.mxu0 0.0
  %285 = vmatpush1.msra.mxu0 %v253
  %286 = vmatprep.subr.mxu0 0.0
  %287 = vmatpush1.msra.mxu0 %v254
  %288 = vmatprep.subr.mxu0 0.0
  %289 = vmatpush1.msra.mxu0 0.0
  %290 = vmatprep.subr.mxu0 0.0
  %291 = vmatpush1.msra.mxu0 0.0
  %292 = vmatprep.subr.mxu0 0.0
  %293 = vmatpush1.msra.mxu0 0.0
  %294 = vmatprep.subr.mxu0 0.0
  %295 = vmatpush1.msra.mxu0 0.0
  %296 = vmatprep.subr.mxu0 0.0
  %297 = vmatpush1.msra.mxu0 0.0
  %298 = vmatprep.subr.mxu0 0.0
  %299 = vmatpush1.msra.mxu0 0.0
  %300 = vmatprep.subr.mxu0 0.0
  %301 = vmatpush1.msra.mxu0 0.0
  %302 = vmatprep.subr.mxu0 0.0
  %303 = vmatpush1.msra.mxu0 0.0
  %304 = vmatprep.subr.mxu0 0.0
  %305 = vmatpush1.msra.mxu0 0.0
  %306 = vmatprep.subr.mxu0 0.0
  %307 = vmatpush1.msra.mxu0 0.0
  %308 = vmatprep.subr.mxu0 0.0
  %309 = vmatpush1.msra.mxu0 0.0
  %310 = vmatprep.subr.mxu0 0.0
  %311 = vmatpush1.msra.mxu0 0.0
  %312 = vmatprep.subr.mxu0 0.0
  %313 = vmatpush1.msra.mxu0 0.0
  %314 = vmatprep.subr.mxu0 0.0
  %315 = vmatpush1.msra.mxu0 0.0
  %316 = vmatprep.subr.mxu0 0.0
  %317 = vmatpush1.msra.mxu0 0.0
  %318 = vmatprep.subr.mxu0 0.0
  %319 = vmatpush1.msra.mxu0 0.0
  %320 = vmatprep.subr.mxu0 0.0
  %321 = vmatpush1.msra.mxu0 0.0
  %322 = vmatprep.subr.mxu0 0.0
  %323 = vmatpush1.msra.mxu0 0.0
  %324 = vmatprep.subr.mxu0 0.0
  %325 = vmatpush1.msra.mxu0 0.0
  %326 = vmatprep.subr.mxu0 0.0
  %327 = vmatpush1.msra.mxu0 0.0
  %328 = vmatprep.subr.mxu0 0.0
  %329 = vmatpush1.msra.mxu0 0.0
  %330 = vmatprep.subr.mxu0 0.0
  %331 = vmatpush1.msra.mxu0 0.0
  %332 = vmatprep.subr.mxu0 0.0
  %333 = vmatpush1.msra.mxu0 0.0
  %334 = vmatprep.subr.mxu0 0.0
  %335 = vmatpush1.msra.mxu0 0.0
  %336 = vmatprep.mubr.f32.mxu0 0.0
  %337 = vmatmul.mubr.f32.gmra.mrb[0].mxu0 %v264
  %v338 = vpop.f32.mrb[0].mxu0
  %v339 = vadd.f32 %v260, %v338
  %v340 = vpop.f32.mrb[0].mxu0
  %341 = vmatprep.mubr.f32.mxu0 0.0
  %342 = vmatmul.mubr.f32.gmra.mrb[0].mxu0 %v267
  %v343 = vpop.f32.mrb[0].mxu0
  %v344 = vadd.f32 %v260, %v343
  %v345 = vpop.f32.mrb[0].mxu0
  %346 = vmatprep.mubr.f32.mxu0 0.0
  %347 = vmatmul.mubr.f32.gmra.mrb[0].mxu0 %v270
  %v348 = vpop.f32.mrb[0].mxu0
  %v349 = vadd.f32 %v260, %v348
  %v350 = vpop.f32.mrb[0].mxu0
  %351 = vdwg.mxu0
  %v352 = vsub.f32 0.0, %v339
  %v353 = vsub.f32 0.0, %v344
  %v354 = vsub.f32 0.0, %v349
  %v355 = vmul.f32 %v352, 1.442695
  %v356 = vpow.pop %v355
  %v357 = vmul.f32 %v353, 1.442695
  %v358 = vpow.pop %v357
  %v359 = vmul.f32 %v354, 1.442695
  %v360 = vpow.pop %v359
  %v361 = vadd.f32 %v356, 1.0
  %v362 = vadd.f32 %v358, 1.0
  %v363 = vadd.f32 %v360, 1.0
  %v364 = vrcp.pop %v361
  %v365 = vmul.f32 1.0, %v364
  %v366 = vrcp.pop %v362
  %v367 = vmul.f32 1.0, %v366
  %v368 = vrcp.pop %v363
  %v369 = vmul.f32 1.0, %v368
  %vm370 = vcmask 130048
  %371 = vst.msk [vmem:[%s7] sm:$0xff] %vm370, %v365
  %372 = vst.msk [vmem:[%s7 + $0x8] sm:$0xff] %vm370, %v367
  %vm373 = vcmask 124928
  %374 = vst.msk [vmem:[%s7 + $0x10] sm:$0x7] %vm373, %v369
  // Predicated region
  $region30: #{tpu_custom_call.1} parent=0 // pred_check
    _
  $region31: #{tpu_custom_call.1} parent=0 // pred_check_branch
    %376 = sbr.rel (0) target = $region33
  $region32: #{tpu_custom_call.1} parent=0 // pred_region
    _
  $region33: #{tpu_custom_call.1} parent=0 // pred_fallthru
    _
  // Predicated region
  $region34: #{tpu_custom_call.1} parent=0 // pred_check
    _
  $region35: #{tpu_custom_call.1} parent=0 // pred_check_branch
    %378 = sbr.rel (0) target = $region37
  $region36: #{tpu_custom_call.1} parent=0 // pred_region
    _
  $region37: #{tpu_custom_call.1} parent=0 // pred_fallthru
    _

</llo_original>
